<compile_context>
chip_gen: v6e
topology: v6e:2x2x1
jax: 0.10.0
libtpu: 0.0.40
codegen_flags: <defaults>
</compile_context>

<pallas_src>
import functools

import jax
import jax.numpy as jnp
from jax.experimental import pallas as pl
from jax.experimental.pallas import tpu as pltpu


def _item_tower_kernel(x_ref, w_ref, b_ref, o_ref):
    # Cast x to bf16 on the VPU (compute slots have slack; saves an XLA pass over x).
    x = x_ref[...].astype(jnp.bfloat16)
    # Linear: y = x @ W + b.  bf16 MXU inputs, f32 accumulation.
    y = jnp.dot(x, w_ref[...], preferred_element_type=jnp.float32)
    y = y + b_ref[...]  # (1, d) f32 bias broadcasts over rows
    # F.normalize(y, dim=-1): y / max(||y||, 1e-12) == y * rsqrt(max(sum(y^2), 1e-24))
    sumsq = jnp.sum(y * y, axis=-1, keepdims=True)
    inv = jax.lax.rsqrt(jnp.maximum(sumsq, 1e-24))  # EUP rsqrt; avoids VPU divide
    o_ref[...] = (y * inv).astype(o_ref.dtype)


def prepare_item_tower_params(weight, bias, *, weight_dtype=jnp.bfloat16):
    """One-time parameter prep (load time, NOT the hot path).

    weight: (d_out, d_in) PyTorch layout -> returned (d_in, d_out) in weight_dtype.
    bias:   (d_out,)                     -> returned (1, d_out) float32.
    Use weight_dtype=jnp.float32 if bf16 weight precision is a concern; the weight
    DMA is grid-invariant so the extra bytes are amortized.
    """
    w_t = jnp.asarray(weight).T.astype(weight_dtype)
    b2 = jnp.asarray(bias).reshape(1, -1).astype(jnp.float32)
    return w_t, b2


def _round_up(n, m):
    return ((n + m - 1) // m) * m


@functools.partial(jax.jit, static_argnames=("tile_m", "out_dtype"))
def item_tower_forward(x, w_t, b2, *, tile_m=512, out_dtype=jnp.float32):
    """x: (B, d) f32; w_t: (d, d) pre-transposed (d_in, d_out); b2: (1, d) f32."""
    B, d = x.shape
    assert w_t.shape == (d, d) and b2.shape == (1, d)

    # Row tile: multiple of 8 (sublane rule), capped at tile_m, and small/mid
    # batches split into >=2 tiles so both v7x TensorCores get work.
    tile = min(tile_m, max(8, _round_up(-(-B // 2), 8)))
    grid = pl.cdiv(B, tile)  # no padding: boundary block handled by the pipeline

    out = pl.pallas_call(
        _item_tower_kernel,
        out_shape=jax.ShapeDtypeStruct((B, d), out_dtype),
        grid_spec=pltpu.PrefetchScalarGridSpec(
            num_scalar_prefetch=0,
            grid=(grid,),
            in_specs=[
                pl.BlockSpec((tile, d), lambda i: (i, 0)),  # x row-tile (f32 in HBM)
                # Grid-invariant weight kept resident in VMEM (bf16 d=384 ~ 288 KiB).
                pl.BlockSpec((d, d), lambda i: (0, 0)),
                pl.BlockSpec((1, d), lambda i: (0, 0)),     # bias row
            ],
            out_specs=pl.BlockSpec((tile, d), lambda i: (i, 0)),
        ),
        compiler_params=pltpu.CompilerParams(
            dimension_semantics=("parallel",),  # row tiles shard across v7x TCs
        ),
    )(x, w_t, b2)
    return out


def _reference(x, weight, bias):
    y = x @ weight.T + bias
    n = jnp.maximum(jnp.sqrt(jnp.sum(y * y, axis=-1, keepdims=True)), 1e-12)
    return y / n


if __name__ == "__main__":
    d = 384  # module default

    key = jax.random.PRNGKey(0)
    kx, kw, kb, kx2 = jax.random.split(key, 4)

    # Deterministic synthetic parameters (mimicking nn.Linear's uniform init range).
    bound = 1.0 / (d ** 0.5)
    weight = jax.random.uniform(kw, (d, d), jnp.float32, -bound, bound)
    bias = jax.random.uniform(kb, (d,), jnp.float32, -bound, bound)

    # Parameter prep once, outside the hot path.
    w_t, b2 = prepare_item_tower_params(weight, bias)

    # Small batch (single grid step, tile == B).
    B = 8
    x = jax.random.normal(kx, (B, d), jnp.float32)
    out = jax.block_until_ready(item_tower_forward(x, w_t, b2))
    ref = _reference(x, weight, bias)
    assert out.shape == (B, d)
    # bf16 matmul inputs -> loosen tolerance vs the f32 reference.
    assert jnp.allclose(out, ref, atol=5e-3, rtol=5e-3), "mismatch vs reference (B=8)"
    assert jnp.allclose(jnp.linalg.norm(out, axis=-1), 1.0, atol=1e-3), "rows not unit-norm"

    # Ragged batch: multi-step grid with a masked boundary block (no pad/slice).
    B2 = 100
    x2 = jax.random.normal(kx2, (B2, d), jnp.float32)
    out2 = jax.block_until_ready(item_tower_forward(x2, w_t, b2, tile_m=64))
    ref2 = _reference(x2, weight, bias)
    assert out2.shape == (B2, d)
    assert jnp.allclose(out2, ref2, atol=5e-3, rtol=5e-3), "mismatch vs reference (B=100)"

    # bf16 output path (epilogue math stays f32, only the store narrows).
    out3 = jax.block_until_ready(
        item_tower_forward(x2, w_t, b2, out_dtype=jnp.bfloat16))
    assert out3.dtype == jnp.bfloat16 and out3.shape == (B2, d)
    assert jnp.allclose(out3.astype(jnp.float32), ref2, atol=2e-2, rtol=2e-2), \
        "mismatch vs reference (bf16 out)"

    print("KERNEL_OK")
</pallas_src>

<mosaic_0001>
module attributes {stable_mosaic.version = 11 : i64} {
  func.func @_item_tower_kernel(%arg0: i32, %arg1: memref<8x384xf32, #tpu.memory_space<vmem>>, %arg2: memref<384x384xbf16, #tpu.memory_space<vmem>>, %arg3: memref<1x384xf32, #tpu.memory_space<vmem>>, %arg4: memref<8x384xf32, #tpu.memory_space<vmem>>) attributes {dimension_semantics = [#tpu.dimension_semantics<parallel>], iteration_bounds = array<i64: 1>, scalar_prefetch = 0 : i64, scratch_operands = 0 : i64, tpu.core_type = #tpu.core_type<tc>, window_params = [{transform_indices = @transform_0, window_bounds = array<i64: 8, 384>}, {pipeline_mode = #tpu.pipeline_mode<synchronous>, transform_indices = @transform_1, window_bounds = array<i64: 384, 384>}, {pipeline_mode = #tpu.pipeline_mode<synchronous>, transform_indices = @transform_2, window_bounds = array<i64: 1, 384>}, {transform_indices = @transform_3, window_bounds = array<i64: 8, 384>}]} {
    %c0 = arith.constant 0 : index
    %c0_0 = arith.constant 0 : index
    %0 = vector.load %arg1[%c0, %c0_0] : memref<8x384xf32, #tpu.memory_space<vmem>>, vector<8x384xf32>
    %1 = arith.truncf %0 : vector<8x384xf32> to vector<8x384xbf16>
    %c0_1 = arith.constant 0 : index
    %c0_2 = arith.constant 0 : index
    %2 = vector.load %arg2[%c0_1, %c0_2] : memref<384x384xbf16, #tpu.memory_space<vmem>>, vector<384x384xbf16>
    %cst = arith.constant dense<0.000000e+00> : vector<8x384xf32>
    %3 = tpu.matmul %1, %2, %cst {dimension_numbers = #tpu.dot_dimension_numbers<[1], [0], [0], [1], [0, 0, 1, 1], [], []>} : vector<8x384xbf16>, vector<384x384xbf16>, vector<8x384xf32> -> vector<8x384xf32>
    %c0_3 = arith.constant 0 : index
    %c0_4 = arith.constant 0 : index
    %4 = vector.load %arg3[%c0_3, %c0_4] : memref<1x384xf32, #tpu.memory_space<vmem>>, vector<1x384xf32>
    %5 = vector.broadcast %4 : vector<1x384xf32> to vector<8x384xf32>
    %6 = arith.addf %3, %5 : vector<8x384xf32>
    %7 = arith.mulf %6, %6 : vector<8x384xf32>
    %cst_5 = arith.constant dense<0.000000e+00> : vector<8xf32>
    %8 = vector.multi_reduction <add>, %7, %cst_5 [1] : vector<8x384xf32> to vector<8xf32>
    %9 = vector.shape_cast %8 : vector<8xf32> to vector<8x1xf32>
    %cst_6 = arith.constant 1.000000e-24 : f32
    %10 = vector.broadcast %cst_6 : f32 to vector<8x1xf32>
    %11 = arith.maximumf %9, %10 : vector<8x1xf32>
    %12 = math.rsqrt %11 : vector<8x1xf32>
    %13 = vector.broadcast %12 : vector<8x1xf32> to vector<8x384xf32>
    %14 = arith.mulf %6, %13 : vector<8x384xf32>
    %c0_7 = arith.constant 0 : index
    %c0_8 = arith.constant 0 : index
    %15 = vector.load %arg4[%c0_7, %c0_8] : memref<8x384xf32, #tpu.memory_space<vmem>>, vector<8x384xf32>
    tpu.vector_store %arg4[%c0_7, %c0_8], %14 {strides = array<i32>} : memref<8x384xf32, #tpu.memory_space<vmem>>, vector<8x384xf32>,
    return
  }
  func.func @transform_0(%arg0: i32) -> (i32, i32) {
    %c0_i32 = arith.constant 0 : i32
    %c0_i32_0 = arith.constant 0 : i32
    return %arg0, %c0_i32 : i32, i32
  }
  func.func @transform_1(%arg0: i32) -> (i32, i32) {
    %c0_i32 = arith.constant 0 : i32
    %c0_i32_0 = arith.constant 0 : i32
    %c0_i32_1 = arith.constant 0 : i32
    return %c0_i32, %c0_i32_0 : i32, i32
  }
  func.func @transform_2(%arg0: i32) -> (i32, i32) {
    %c0_i32 = arith.constant 0 : i32
    %c0_i32_0 = arith.constant 0 : i32
    %c0_i32_1 = arith.constant 0 : i32
    return %c0_i32, %c0_i32_0 : i32, i32
  }
  func.func @transform_3(%arg0: i32) -> (i32, i32) {
    %c0_i32 = arith.constant 0 : i32
    %c0_i32_0 = arith.constant 0 : i32
    return %arg0, %c0_i32 : i32, i32
  }
}

</mosaic_0001>

<llo_original>
// kernel: item_tower_forward.1
$region0: #{item_tower_forward.1}
  #allocation0 [shape = 'u32[]', space=smem, size = 0x4, offset = 0x4, fixed_abs, tag = 'smem constant byte address 0x4 - core index']
  #allocation1 [shape = 'u32[144,128]{1,0:T(1,128)}', space=vmem, size = 0x12000, scoped, tag = 'internal scratch']
  %s0 = inlined_call_operand.hbm [shape: f32[8,384], index: 0, kind: input, shape index: {}]
  %s1 = inlined_call_operand.hbm [shape: bf16[384,384], index: 1, kind: input, shape index: {}]
  %s2 = inlined_call_operand.vmem [shape: f32[1,384], index: 2, kind: input, shape index: {}]
  %s3 = inlined_call_operand.hbm [shape: f32[8,384], index: 3, kind: output, shape index: {}]
  %s4 = sld [smem:[#allocation0]]
  $region30: #{item_tower_forward.1} parent=0
    _
  %s6 = ssub.s32 1, %s4
  %s7 = scalar_select 0, %s6, %s4
  $region1: #{item_tower_forward.1} parent=0
    #allocation2 [shape = 'u8[12288]{0}', space=vmem, size = 0x3000, scoped, tag = 'input window, operand 0, single buffered']
    #allocation3 [shape = 's32[1]{0}', space=sflag, size = 0x4, scoped, tag = 'scoped memory for item_tower_forward.1']
    #allocation4 [shape = 's32[1]{0}', space=sflag, size = 0x4, scoped, tag = 'scoped memory for item_tower_forward.1']
    #allocation5 [shape = 'u8[294912]{0}', space=vmem, size = 0x48000, scoped, tag = 'input window, operand 1, single buffered']
    #allocation6 [shape = 's32[1]{0}', space=sflag, size = 0x4, scoped, tag = 'scoped memory for item_tower_forward.1']
    #allocation7 [shape = 'u8[12288]{0}', space=vmem, size = 0x3000, scoped, tag = 'output window, operand 0, single buffered']
    %8 = vsyncpa [#allocation3], 0
    %9 = vsyncpa [#allocation6], 0
    %10 = vsyncpa [#allocation4], 0
    // Predicated region
    $region2: #{item_tower_forward.1} parent=1 // pred_check
      _
    $region3: #{item_tower_forward.1} parent=1 // pred_check_branch
      %12 = sbr.rel (0) target = $region5
    $region4: #{item_tower_forward.1} parent=1 // pred_region
      %s14 = ssub.s32 384, 384
      %15 = vsyncadd [#allocation3], %s14
      %s17 = sshll.u32 [#allocation2], 4
      %s18 = int_to_ptr.vmem [resolvable:$true] %s17
      %20 = dma.hbm_to_vmem [thread:$0]  %s0, 384, %s18, [#allocation3]
    $region5: #{item_tower_forward.1} parent=1 // pred_fallthru
      _
    // Predicated region
    $region6: #{item_tower_forward.1} parent=1 // pred_check
      _
    $region7: #{item_tower_forward.1} parent=1 // pred_check_branch
      %22 = sbr.rel (0) target = $region9
    $region8: #{item_tower_forward.1} parent=1 // pred_region
      %s24 = ssub.s32 9216, 9216
      %25 = vsyncadd [#allocation6], %s24
      %s26 = sshll.u32 [#allocation5], 4
      %s27 = int_to_ptr.vmem [resolvable:$true] %s26
      %32 = dma.hbm_to_vmem [thread:$0]  %s1, 9216, %s27, [#allocation6], 192, 192, 12
    $region9: #{item_tower_forward.1} parent=1 // pred_fallthru
      _
    // Predicated region
    $region10: #{item_tower_forward.1} parent=1 // pred_check
      _
    $region11: #{item_tower_forward.1} parent=1 // pred_check_branch
      %34 = sbr.rel (0) target = $region13
    $region12: #{item_tower_forward.1} parent=1 // pred_region
      _
    $region13: #{item_tower_forward.1} parent=1 // pred_fallthru
      _
    // Predicated region
    $region14: #{item_tower_forward.1} parent=1 // pred_check
      _
    $region15: #{item_tower_forward.1} parent=1 // pred_check_branch
      %36 = sbr.rel (0) target = $region17
    $region16: #{item_tower_forward.1} parent=1 // pred_region
      %37 = dma.done [#allocation3], 384
    $region17: #{item_tower_forward.1} parent=1 // pred_fallthru
      _
    // Predicated region
    $region18: #{item_tower_forward.1} parent=1 // pred_check
      _
    $region19: #{item_tower_forward.1} parent=1 // pred_check_branch
      %39 = sbr.rel (0) target = $region21
    $region20: #{item_tower_forward.1} parent=1 // pred_region
      %40 = dma.done [#allocation6], 9216
    $region21: #{item_tower_forward.1} parent=1 // pred_fallthru
      _
    %v42 = vld [vmem:[#allocation2] sm:$0xff]
    %v43 = vld [vmem:[#allocation2 + $0x8] sm:$0xff]
    %v44 = vld [vmem:[#allocation2 + $0x10] sm:$0xff]
    %v45 = vpack.c.bf16 %v42, %v42
    %v46 = vpack.c.bf16 %v43, %v43
    %v47 = vpack.c.bf16 %v44, %v44
    %v48 = vld [vmem:[#allocation5] sm:$0xff]
    %v49 = vld [vmem:[#allocation5 + $0x8] sm:$0xf]
    %v50 = vld [vmem:[#allocation5 + $0xc] sm:$0xff]
    %v51 = vld [vmem:[#allocation5 + $0x14] sm:$0xf]
    %v52 = vld [vmem:[#allocation5 + $0x18] sm:$0xff]
    %v53 = vld [vmem:[#allocation5 + $0x20] sm:$0xf]
    %v54 = vld [vmem:[#allocation5 + $0x24] sm:$0xff]
    %v55 = vld [vmem:[#allocation5 + $0x2c] sm:$0xf]
    %v56 = vld [vmem:[#allocation5 + $0x30] sm:$0xff]
    %v57 = vld [vmem:[#allocation5 + $0x38] sm:$0xf]
    %v58 = vld [vmem:[#allocation5 + $0x3c] sm:$0xff]
    %v59 = vld [vmem:[#allocation5 + $0x44] sm:$0xf]
    %v60 = vld [vmem:[#allocation5 + $0x48] sm:$0xff]
    %v61 = vld [vmem:[#allocation5 + $0x50] sm:$0xf]
    %v62 = vld [vmem:[#allocation5 + $0x54] sm:$0xff]
    %v63 = vld [vmem:[#allocation5 + $0x5c] sm:$0xf]
    %v64 = vld [vmem:[#allocation5 + $0x60] sm:$0xff]
    %v65 = vld [vmem:[#allocation5 + $0x68] sm:$0xf]
    %v66 = vld [vmem:[#allocation5 + $0x6c] sm:$0xff]
    %v67 = vld [vmem:[#allocation5 + $0x74] sm:$0xf]
    %v68 = vld [vmem:[#allocation5 + $0x78] sm:$0xff]
    %v69 = vld [vmem:[#allocation5 + $0x80] sm:$0xf]
    %v70 = vld [vmem:[#allocation5 + $0x84] sm:$0xff]
    %v71 = vld [vmem:[#allocation5 + $0x8c] sm:$0xf]
    %v72 = vld [vmem:[#allocation5 + $0x90] sm:$0xff]
    %v73 = vld [vmem:[#allocation5 + $0x98] sm:$0xf]
    %v74 = vld [vmem:[#allocation5 + $0x9c] sm:$0xff]
    %v75 = vld [vmem:[#allocation5 + $0xa4] sm:$0xf]
    %v76 = vld [vmem:[#allocation5 + $0xa8] sm:$0xff]
    %v77 = vld [vmem:[#allocation5 + $0xb0] sm:$0xf]
    %v78 = vld [vmem:[#allocation5 + $0xb4] sm:$0xff]
    %v79 = vld [vmem:[#allocation5 + $0xbc] sm:$0xf]
    %v80 = vld [vmem:[#allocation5 + $0xc0] sm:$0xff]
    %v81 = vld [vmem:[#allocation5 + $0xc8] sm:$0xf]
    %v82 = vld [vmem:[#allocation5 + $0xcc] sm:$0xff]
    %v83 = vld [vmem:[#allocation5 + $0xd4] sm:$0xf]
    %v84 = vld [vmem:[#allocation5 + $0xd8] sm:$0xff]
    %v85 = vld [vmem:[#allocation5 + $0xe0] sm:$0xf]
    %v86 = vld [vmem:[#allocation5 + $0xe4] sm:$0xff]
    %v87 = vld [vmem:[#allocation5 + $0xec] sm:$0xf]
    %v88 = vld [vmem:[#allocation5 + $0xf0] sm:$0xff]
    %v89 = vld [vmem:[#allocation5 + $0xf8] sm:$0xf]
    %v90 = vld [vmem:[#allocation5 + $0xfc] sm:$0xff]
    %v91 = vld [vmem:[#allocation5 + $0x104] sm:$0xf]
    %v92 = vld [vmem:[#allocation5 + $0x108] sm:$0xff]
    %v93 = vld [vmem:[#allocation5 + $0x110] sm:$0xf]
    %v94 = vld [vmem:[#allocation5 + $0x114] sm:$0xff]
    %v95 = vld [vmem:[#allocation5 + $0x11c] sm:$0xf]
    %v96 = vld [vmem:[#allocation5 + $0x120] sm:$0xff]
    %v97 = vld [vmem:[#allocation5 + $0x128] sm:$0xf]
    %v98 = vld [vmem:[#allocation5 + $0x12c] sm:$0xff]
    %v99 = vld [vmem:[#allocation5 + $0x134] sm:$0xf]
    %v100 = vld [vmem:[#allocation5 + $0x138] sm:$0xff]
    %v101 = vld [vmem:[#allocation5 + $0x140] sm:$0xf]
    %v102 = vld [vmem:[#allocation5 + $0x144] sm:$0xff]
    %v103 = vld [vmem:[#allocation5 + $0x14c] sm:$0xf]
    %v104 = vld [vmem:[#allocation5 + $0x150] sm:$0xff]
    %v105 = vld [vmem:[#allocation5 + $0x158] sm:$0xf]
    %v106 = vld [vmem:[#allocation5 + $0x15c] sm:$0xff]
    %v107 = vld [vmem:[#allocation5 + $0x164] sm:$0xf]
    %v108 = vld [vmem:[#allocation5 + $0x168] sm:$0xff]
    %v109 = vld [vmem:[#allocation5 + $0x170] sm:$0xf]
    %v110 = vld [vmem:[#allocation5 + $0x174] sm:$0xff]
    %v111 = vld [vmem:[#allocation5 + $0x17c] sm:$0xf]
    %v112 = vld [vmem:[#allocation5 + $0x180] sm:$0xff]
    %v113 = vld [vmem:[#allocation5 + $0x188] sm:$0xf]
    %v114 = vld [vmem:[#allocation5 + $0x18c] sm:$0xff]
    %v115 = vld [vmem:[#allocation5 + $0x194] sm:$0xf]
    %v116 = vld [vmem:[#allocation5 + $0x198] sm:$0xff]
    %v117 = vld [vmem:[#allocation5 + $0x1a0] sm:$0xf]
    %v118 = vld [vmem:[#allocation5 + $0x1a4] sm:$0xff]
    %v119 = vld [vmem:[#allocation5 + $0x1ac] sm:$0xf]
    %v120 = vld [vmem:[#allocation5 + $0x1b0] sm:$0xff]
    %v121 = vld [vmem:[#allocation5 + $0x1b8] sm:$0xf]
    %v122 = vld [vmem:[#allocation5 + $0x1bc] sm:$0xff]
    %v123 = vld [vmem:[#allocation5 + $0x1c4] sm:$0xf]
    %v124 = vld [vmem:[#allocation5 + $0x1c8] sm:$0xff]
    %v125 = vld [vmem:[#allocation5 + $0x1d0] sm:$0xf]
    %v126 = vld [vmem:[#allocation5 + $0x1d4] sm:$0xff]
    %v127 = vld [vmem:[#allocation5 + $0x1dc] sm:$0xf]
    %v128 = vld [vmem:[#allocation5 + $0x1e0] sm:$0xff]
    %v129 = vld [vmem:[#allocation5 + $0x1e8] sm:$0xf]
    %v130 = vld [vmem:[#allocation5 + $0x1ec] sm:$0xff]
    %v131 = vld [vmem:[#allocation5 + $0x1f4] sm:$0xf]
    %v132 = vld [vmem:[#allocation5 + $0x1f8] sm:$0xff]
    %v133 = vld [vmem:[#allocation5 + $0x200] sm:$0xf]
    %v134 = vld [vmem:[#allocation5 + $0x204] sm:$0xff]
    %v135 = vld [vmem:[#allocation5 + $0x20c] sm:$0xf]
    %v136 = vld [vmem:[#allocation5 + $0x210] sm:$0xff]
    %v137 = vld [vmem:[#allocation5 + $0x218] sm:$0xf]
    %v138 = vld [vmem:[#allocation5 + $0x21c] sm:$0xff]
    %v139 = vld [vmem:[#allocation5 + $0x224] sm:$0xf]
    %v140 = vld [vmem:[#allocation5 + $0x228] sm:$0xff]
    %v141 = vld [vmem:[#allocation5 + $0x230] sm:$0xf]
    %v142 = vld [vmem:[#allocation5 + $0x234] sm:$0xff]
    %v143 = vld [vmem:[#allocation5 + $0x23c] sm:$0xf]
    %v144 = vld [vmem:[%s2] sm:$0x7]
    %v146 = vlaneseq
    %v147 = vshrl.u32 %v146, 7
    %v148 = vsub.s32 0, %v147
    %v149 = vrot.slane %v144, %v148
    %v150 = vlaneseq
    %v151 = vshrl.u32 %v150, 7
    %v152 = vsub.s32 1, %v151
    %v153 = vrot.slane %v144, %v152
    %v154 = vlaneseq
    %v155 = vshrl.u32 %v154, 7
    %v156 = vsub.s32 2, %v155
    %v157 = vrot.slane %v144, %v156
    %v257 = vunpack.c.l.b16 %v48
    %v258 = vunpack.c.h.b16 %v48
    %v259 = vunpack.c.l.b16 %v49
    %v260 = vunpack.c.l.b16 %v50
    %v261 = vunpack.c.h.b16 %v50
    %v262 = vunpack.c.l.b16 %v51
    %v263 = vunpack.c.l.b16 %v52
    %v264 = vunpack.c.h.b16 %v52
    %v265 = vunpack.c.l.b16 %v53
    %v266 = vunpack.c.l.b16 %v54
    %v267 = vunpack.c.h.b16 %v54
    %v268 = vunpack.c.l.b16 %v55
    %v269 = vunpack.c.l.b16 %v56
    %v270 = vunpack.c.h.b16 %v56
    %v271 = vunpack.c.l.b16 %v57
    %v272 = vunpack.c.l.b16 %v58
    %v273 = vunpack.c.h.b16 %v58
    %v274 = vunpack.c.l.b16 %v59
    %v275 = vunpack.c.l.b16 %v60
    %v276 = vunpack.c.h.b16 %v60
    %v277 = vunpack.c.l.b16 %v61
    %v278 = vunpack.c.l.b16 %v62
    %v279 = vunpack.c.h.b16 %v62
    %v280 = vunpack.c.l.b16 %v63
    %v281 = vunpack.c.l.b16 %v64
    %v282 = vunpack.c.h.b16 %v64
    %v283 = vunpack.c.l.b16 %v65
    %v284 = vunpack.c.l.b16 %v66
    %v285 = vunpack.c.h.b16 %v66
    %v286 = vunpack.c.l.b16 %v67
    %v287 = vunpack.c.l.b16 %v68
    %v288 = vunpack.c.h.b16 %v68
    %v289 = vunpack.c.l.b16 %v69
    %v290 = vunpack.c.l.b16 %v70
    %v291 = vunpack.c.h.b16 %v70
    %v292 = vunpack.c.l.b16 %v71
    %v293 = vunpack.c.l.b16 %v72
    %v294 = vunpack.c.h.b16 %v72
    %v295 = vunpack.c.l.b16 %v73
    %v296 = vunpack.c.l.b16 %v74
    %v297 = vunpack.c.h.b16 %v74
    %v298 = vunpack.c.l.b16 %v75
    %v299 = vunpack.c.l.b16 %v76
    %v300 = vunpack.c.h.b16 %v76
    %v301 = vunpack.c.l.b16 %v77
    %v302 = vunpack.c.l.b16 %v78
    %v303 = vunpack.c.h.b16 %v78
    %v304 = vunpack.c.l.b16 %v79
    %v305 = vunpack.c.l.b16 %v80
    %v306 = vunpack.c.h.b16 %v80
    %v307 = vunpack.c.l.b16 %v81
    %v308 = vunpack.c.l.b16 %v82
    %v309 = vunpack.c.h.b16 %v82
    %v310 = vunpack.c.l.b16 %v83
    %v311 = vunpack.c.l.b16 %v84
    %v312 = vunpack.c.h.b16 %v84
    %v313 = vunpack.c.l.b16 %v85
    %v314 = vunpack.c.l.b16 %v86
    %v315 = vunpack.c.h.b16 %v86
    %v316 = vunpack.c.l.b16 %v87
    %v317 = vunpack.c.l.b16 %v88
    %v318 = vunpack.c.h.b16 %v88
    %v319 = vunpack.c.l.b16 %v89
    %v320 = vunpack.c.l.b16 %v90
    %v321 = vunpack.c.h.b16 %v90
    %v322 = vunpack.c.l.b16 %v91
    %v323 = vunpack.c.l.b16 %v92
    %v324 = vunpack.c.h.b16 %v92
    %v325 = vunpack.c.l.b16 %v93
    %v326 = vunpack.c.l.b16 %v94
    %v327 = vunpack.c.h.b16 %v94
    %v328 = vunpack.c.l.b16 %v95
    %v329 = vunpack.c.l.b16 %v96
    %v330 = vunpack.c.h.b16 %v96
    %v331 = vunpack.c.l.b16 %v97
    %v332 = vunpack.c.l.b16 %v98
    %v333 = vunpack.c.h.b16 %v98
    %v334 = vunpack.c.l.b16 %v99
    %v335 = vunpack.c.l.b16 %v100
    %v336 = vunpack.c.h.b16 %v100
    %v337 = vunpack.c.l.b16 %v101
    %v338 = vunpack.c.l.b16 %v102
    %v339 = vunpack.c.h.b16 %v102
    %v340 = vunpack.c.l.b16 %v103
    %v341 = vunpack.c.l.b16 %v104
    %v342 = vunpack.c.h.b16 %v104
    %v343 = vunpack.c.l.b16 %v105
    %v344 = vunpack.c.l.b16 %v106
    %v345 = vunpack.c.h.b16 %v106
    %v346 = vunpack.c.l.b16 %v107
    %v347 = vunpack.c.l.b16 %v108
    %v348 = vunpack.c.h.b16 %v108
    %v349 = vunpack.c.l.b16 %v109
    %v350 = vunpack.c.l.b16 %v110
    %v351 = vunpack.c.h.b16 %v110
    %v352 = vunpack.c.l.b16 %v111
    %v353 = vunpack.c.l.b16 %v112
    %v354 = vunpack.c.h.b16 %v112
    %v355 = vunpack.c.l.b16 %v113
    %v356 = vunpack.c.l.b16 %v114
    %v357 = vunpack.c.h.b16 %v114
    %v358 = vunpack.c.l.b16 %v115
    %v359 = vunpack.c.l.b16 %v116
    %v360 = vunpack.c.h.b16 %v116
    %v361 = vunpack.c.l.b16 %v117
    %v362 = vunpack.c.l.b16 %v118
    %v363 = vunpack.c.h.b16 %v118
    %v364 = vunpack.c.l.b16 %v119
    %v365 = vunpack.c.l.b16 %v120
    %v366 = vunpack.c.h.b16 %v120
    %v367 = vunpack.c.l.b16 %v121
    %v368 = vunpack.c.l.b16 %v122
    %v369 = vunpack.c.h.b16 %v122
    %v370 = vunpack.c.l.b16 %v123
    %v371 = vunpack.c.l.b16 %v124
    %v372 = vunpack.c.h.b16 %v124
    %v373 = vunpack.c.l.b16 %v125
    %v374 = vunpack.c.l.b16 %v126
    %v375 = vunpack.c.h.b16 %v126
    %v376 = vunpack.c.l.b16 %v127
    %v377 = vunpack.c.l.b16 %v128
    %v378 = vunpack.c.h.b16 %v128
    %v379 = vunpack.c.l.b16 %v129
    %v380 = vunpack.c.l.b16 %v130
    %v381 = vunpack.c.h.b16 %v130
    %v382 = vunpack.c.l.b16 %v131
    %v383 = vunpack.c.l.b16 %v132
    %v384 = vunpack.c.h.b16 %v132
    %v385 = vunpack.c.l.b16 %v133
    %v386 = vunpack.c.l.b16 %v134
    %v387 = vunpack.c.h.b16 %v134
    %v388 = vunpack.c.l.b16 %v135
    %v389 = vunpack.c.l.b16 %v136
    %v390 = vunpack.c.h.b16 %v136
    %v391 = vunpack.c.l.b16 %v137
    %v392 = vunpack.c.l.b16 %v138
    %v393 = vunpack.c.h.b16 %v138
    %v394 = vunpack.c.l.b16 %v139
    %v395 = vunpack.c.l.b16 %v140
    %v396 = vunpack.c.h.b16 %v140
    %v397 = vunpack.c.l.b16 %v141
    %v398 = vunpack.c.l.b16 %v142
    %v399 = vunpack.c.h.b16 %v142
    %v400 = vunpack.c.l.b16 %v143
    %v401 = vpack.c.b16 %v260, %v257
    %v402 = vpack.c.b16 %v261, %v258
    %v403 = vpack.c.b16 %v262, %v259
    %v404 = vpack.c.b16 %v266, %v263
    %v405 = vpack.c.b16 %v267, %v264
    %v406 = vpack.c.b16 %v268, %v265
    %v407 = vpack.c.b16 %v272, %v269
    %v408 = vpack.c.b16 %v273, %v270
    %v409 = vpack.c.b16 %v274, %v271
    %v410 = vpack.c.b16 %v278, %v275
    %v411 = vpack.c.b16 %v279, %v276
    %v412 = vpack.c.b16 %v280, %v277
    %v413 = vpack.c.b16 %v284, %v281
    %v414 = vpack.c.b16 %v285, %v282
    %v415 = vpack.c.b16 %v286, %v283
    %v416 = vpack.c.b16 %v290, %v287
    %v417 = vpack.c.b16 %v291, %v288
    %v418 = vpack.c.b16 %v292, %v289
    %v419 = vpack.c.b16 %v296, %v293
    %v420 = vpack.c.b16 %v297, %v294
    %v421 = vpack.c.b16 %v298, %v295
    %v422 = vpack.c.b16 %v302, %v299
    %v423 = vpack.c.b16 %v303, %v300
    %v424 = vpack.c.b16 %v304, %v301
    %v425 = vpack.c.b16 %v308, %v305
    %v426 = vpack.c.b16 %v309, %v306
    %v427 = vpack.c.b16 %v310, %v307
    %v428 = vpack.c.b16 %v314, %v311
    %v429 = vpack.c.b16 %v315, %v312
    %v430 = vpack.c.b16 %v316, %v313
    %v431 = vpack.c.b16 %v320, %v317
    %v432 = vpack.c.b16 %v321, %v318
    %v433 = vpack.c.b16 %v322, %v319
    %v434 = vpack.c.b16 %v326, %v323
    %v435 = vpack.c.b16 %v327, %v324
    %v436 = vpack.c.b16 %v328, %v325
    %v437 = vpack.c.b16 %v332, %v329
    %v438 = vpack.c.b16 %v333, %v330
    %v439 = vpack.c.b16 %v334, %v331
    %v440 = vpack.c.b16 %v338, %v335
    %v441 = vpack.c.b16 %v339, %v336
    %v442 = vpack.c.b16 %v340, %v337
    %v443 = vpack.c.b16 %v344, %v341
    %v444 = vpack.c.b16 %v345, %v342
    %v445 = vpack.c.b16 %v346, %v343
    %v446 = vpack.c.b16 %v350, %v347
    %v447 = vpack.c.b16 %v351, %v348
    %v448 = vpack.c.b16 %v352, %v349
    %v449 = vpack.c.b16 %v356, %v353
    %v450 = vpack.c.b16 %v357, %v354
    %v451 = vpack.c.b16 %v358, %v355
    %v452 = vpack.c.b16 %v362, %v359
    %v453 = vpack.c.b16 %v363, %v360
    %v454 = vpack.c.b16 %v364, %v361
    %v455 = vpack.c.b16 %v368, %v365
    %v456 = vpack.c.b16 %v369, %v366
    %v457 = vpack.c.b16 %v370, %v367
    %v458 = vpack.c.b16 %v374, %v371
    %v459 = vpack.c.b16 %v375, %v372
    %v460 = vpack.c.b16 %v376, %v373
    %v461 = vpack.c.b16 %v380, %v377
    %v462 = vpack.c.b16 %v381, %v378
    %v463 = vpack.c.b16 %v382, %v379
    %v464 = vpack.c.b16 %v386, %v383
    %v465 = vpack.c.b16 %v387, %v384
    %v466 = vpack.c.b16 %v388, %v385
    %v467 = vpack.c.b16 %v392, %v389
    %v468 = vpack.c.b16 %v393, %v390
    %v469 = vpack.c.b16 %v394, %v391
    %v470 = vpack.c.b16 %v398, %v395
    %v471 = vpack.c.b16 %v399, %v396
    %v472 = vpack.c.b16 %v400, %v397
    %545 = vmatprep.subr.bf16.mxu0 %v423
    %546 = vmatpush1.bf16.msra.mxu0 %v422
    %547 = vmatprep.subr.bf16.mxu0 %v420
    %548 = vmatpush1.bf16.msra.mxu0 %v419
    %549 = vmatprep.subr.bf16.mxu0 %v417
    %550 = vmatpush1.bf16.msra.mxu0 %v416
    %551 = vmatprep.subr.bf16.mxu0 %v414
    %552 = vmatpush1.bf16.msra.mxu0 %v413
    %553 = vmatprep.subr.bf16.mxu0 %v411
    %554 = vmatpush1.bf16.msra.mxu0 %v410
    %555 = vmatprep.subr.bf16.mxu0 %v408
    %556 = vmatpush1.bf16.msra.mxu0 %v407
    %557 = vmatprep.subr.bf16.mxu0 %v405
    %558 = vmatpush1.bf16.msra.mxu0 %v404
    %559 = vmatprep.subr.bf16.mxu0 %v402
    %560 = vmatpush1.bf16.msra.mxu0 %v401
    %561 = vmatprep.subr.bf16.mxu0 %v447
    %562 = vmatpush2.bf16.msra.mxu0 %v446
    %563 = vmatprep.subr.bf16.mxu0 %v444
    %564 = vmatpush2.bf16.msra.mxu0 %v443
    %565 = vmatprep.subr.bf16.mxu0 %v441
    %566 = vmatpush2.bf16.msra.mxu0 %v440
    %567 = vmatprep.subr.bf16.mxu0 %v438
    %568 = vmatpush2.bf16.msra.mxu0 %v437
    %569 = vmatprep.subr.bf16.mxu0 %v435
    %570 = vmatpush2.bf16.msra.mxu0 %v434
    %571 = vmatprep.subr.bf16.mxu0 %v432
    %572 = vmatpush2.bf16.msra.mxu0 %v431
    %573 = vmatprep.subr.bf16.mxu0 %v429
    %574 = vmatpush2.bf16.msra.mxu0 %v428
    %575 = vmatprep.subr.bf16.mxu0 %v426
    %576 = vmatpush2.bf16.msra.mxu0 %v425
    %577 = vmatprep.mubr.bf16.mxu0 %v46
    %578 = vmatmul.mubr.bf16.gmra.mxu0 %v45
    %v579 = vpop.f32.mrf.mxu0
    %v580 = vadd.f32 %v149, %v579
    %v581 = vpop.f32.mrf.mxu0
    %v582 = vadd.f32 %v153, %v581
    %v583 = vpop.f32.mrf.mxu0
    %v584 = vpop.f32.mrf.mxu0
    %585 = vdwg.mxu0
    %586 = vmatprep.subr.bf16.mxu0 %v471
    %587 = vmatpush1.bf16.msra.mxu0 %v470
    %588 = vmatprep.subr.bf16.mxu0 %v468
    %589 = vmatpush1.bf16.msra.mxu0 %v467
    %590 = vmatprep.subr.bf16.mxu0 %v465
    %591 = vmatpush1.bf16.msra.mxu0 %v464
    %592 = vmatprep.subr.bf16.mxu0 %v462
    %593 = vmatpush1.bf16.msra.mxu0 %v461
    %594 = vmatprep.subr.bf16.mxu0 %v459
    %595 = vmatpush1.bf16.msra.mxu0 %v458
    %596 = vmatprep.subr.bf16.mxu0 %v456
    %597 = vmatpush1.bf16.msra.mxu0 %v455
    %598 = vmatprep.subr.bf16.mxu0 %v453
    %599 = vmatpush1.bf16.msra.mxu0 %v452
    %600 = vmatprep.subr.bf16.mxu0 %v450
    %601 = vmatpush1.bf16.msra.mxu0 %v449
    %602 = vmatprep.subr.bf16.mxu0 0
    %603 = vmatpush2.bf16.msra.mxu0 0
    %604 = vmatprep.subr.bf16.mxu0 0
    %605 = vmatpush2.bf16.msra.mxu0 0
    %606 = vmatprep.subr.bf16.mxu0 0
    %607 = vmatpush2.bf16.msra.mxu0 0
    %608 = vmatprep.subr.bf16.mxu0 0
    %609 = vmatpush2.bf16.msra.mxu0 0
    %610 = vmatprep.subr.bf16.mxu0 0
    %611 = vmatpush2.bf16.msra.mxu0 0
    %612 = vmatprep.subr.bf16.mxu0 0
    %613 = vmatpush2.bf16.msra.mxu0 0
    %614 = vmatprep.subr.bf16.mxu0 0
    %615 = vmatpush2.bf16.msra.mxu0 0
    %616 = vmatprep.subr.bf16.mxu0 0
    %617 = vmatpush2.bf16.msra.mxu0 0
    %618 = vmatprep.mubr.bf16.mxu0 0
    %619 = vmatmul.mubr.bf16.gmra.mxu0 %v47
    %v620 = vpop.f32.mrf.mxu0
    %v621 = vadd.f32 %v580, %v620
    %v622 = vpop.f32.mrf.mxu0
    %v623 = vadd.f32 %v582, %v622
    %v624 = vpop.f32.mrf.mxu0
    %v625 = vpop.f32.mrf.mxu0
    %626 = vdwg.mxu0
    %627 = vmatprep.subr.bf16.mxu0 0
    %628 = vmatpush1.bf16.msra.mxu0 %v424
    %629 = vmatprep.subr.bf16.mxu0 0
    %630 = vmatpush1.bf16.msra.mxu0 %v421
    %631 = vmatprep.subr.bf16.mxu0 0
    %632 = vmatpush1.bf16.msra.mxu0 %v418
    %633 = vmatprep.subr.bf16.mxu0 0
    %634 = vmatpush1.bf16.msra.mxu0 %v415
    %635 = vmatprep.subr.bf16.mxu0 0
    %636 = vmatpush1.bf16.msra.mxu0 %v412
    %637 = vmatprep.subr.bf16.mxu0 0
    %638 = vmatpush1.bf16.msra.mxu0 %v409
    %639 = vmatprep.subr.bf16.mxu0 0
    %640 = vmatpush1.bf16.msra.mxu0 %v406
    %641 = vmatprep.subr.bf16.mxu0 0
    %642 = vmatpush1.bf16.msra.mxu0 %v403
    %643 = vmatprep.subr.bf16.mxu0 0
    %644 = vmatpush2.bf16.msra.mxu0 %v448
    %645 = vmatprep.subr.bf16.mxu0 0
    %646 = vmatpush2.bf16.msra.mxu0 %v445
    %647 = vmatprep.subr.bf16.mxu0 0
    %648 = vmatpush2.bf16.msra.mxu0 %v442
    %649 = vmatprep.subr.bf16.mxu0 0
    %650 = vmatpush2.bf16.msra.mxu0 %v439
    %651 = vmatprep.subr.bf16.mxu0 0
    %652 = vmatpush2.bf16.msra.mxu0 %v436
    %653 = vmatprep.subr.bf16.mxu0 0
    %654 = vmatpush2.bf16.msra.mxu0 %v433
    %655 = vmatprep.subr.bf16.mxu0 0
    %656 = vmatpush2.bf16.msra.mxu0 %v430
    %657 = vmatprep.subr.bf16.mxu0 0
    %658 = vmatpush2.bf16.msra.mxu0 %v427
    %659 = vmatprep.mubr.bf16.mxu0 %v46
    %660 = vmatmul.mubr.bf16.gmra.mxu0 %v45
    %v661 = vpop.f32.mrf.mxu0
    %v662 = vadd.f32 %v157, %v661
    %v663 = vpop.f32.mrf.mxu0
    %v664 = vpop.f32.mrf.mxu0
    %v665 = vpop.f32.mrf.mxu0
    %666 = vdwg.mxu0
    %667 = vmatprep.subr.bf16.mxu0 0
    %668 = vmatpush1.bf16.msra.mxu0 %v472
    %669 = vmatprep.subr.bf16.mxu0 0
    %670 = vmatpush1.bf16.msra.mxu0 %v469
    %671 = vmatprep.subr.bf16.mxu0 0
    %672 = vmatpush1.bf16.msra.mxu0 %v466
    %673 = vmatprep.subr.bf16.mxu0 0
    %674 = vmatpush1.bf16.msra.mxu0 %v463
    %675 = vmatprep.subr.bf16.mxu0 0
    %676 = vmatpush1.bf16.msra.mxu0 %v460
    %677 = vmatprep.subr.bf16.mxu0 0
    %678 = vmatpush1.bf16.msra.mxu0 %v457
    %679 = vmatprep.subr.bf16.mxu0 0
    %680 = vmatpush1.bf16.msra.mxu0 %v454
    %681 = vmatprep.subr.bf16.mxu0 0
    %682 = vmatpush1.bf16.msra.mxu0 %v451
    %683 = vmatprep.subr.bf16.mxu0 0
    %684 = vmatpush2.bf16.msra.mxu0 0
    %685 = vmatprep.subr.bf16.mxu0 0
    %686 = vmatpush2.bf16.msra.mxu0 0
    %687 = vmatprep.subr.bf16.mxu0 0
    %688 = vmatpush2.bf16.msra.mxu0 0
    %689 = vmatprep.subr.bf16.mxu0 0
    %690 = vmatpush2.bf16.msra.mxu0 0
    %691 = vmatprep.subr.bf16.mxu0 0
    %692 = vmatpush2.bf16.msra.mxu0 0
    %693 = vmatprep.subr.bf16.mxu0 0
    %694 = vmatpush2.bf16.msra.mxu0 0
    %695 = vmatprep.subr.bf16.mxu0 0
    %696 = vmatpush2.bf16.msra.mxu0 0
    %697 = vmatprep.subr.bf16.mxu0 0
    %698 = vmatpush2.bf16.msra.mxu0 0
    %699 = vmatprep.mubr.bf16.mxu0 0
    %700 = vmatmul.mubr.bf16.gmra.mxu0 %v47
    %v701 = vpop.f32.mrf.mxu0
    %v702 = vadd.f32 %v662, %v701
    %v703 = vpop.f32.mrf.mxu0
    %v704 = vpop.f32.mrf.mxu0
    %v705 = vpop.f32.mrf.mxu0
    %706 = vdwg.mxu0
    %v707 = vmul.f32 %v621, %v621
    %v708 = vmul.f32 %v623, %v623
    %v709 = vmul.f32 %v702, %v702
    %v710 = vadd.f32 %v707, %v708
    %v711 = vadd.f32 %v710, %v709
    %712 = vadd.xlane.f32.xlu0 %v711
    %v713 = vpop.xlane.xlu0 %712
    %v714 = vmax.f32 %v713, 1e-24
    %v715 = vrsqrt.pop %v714
    %v716 = vmul.f32 %v621, %v715
    %v717 = vmul.f32 %v623, %v715
    %v718 = vmul.f32 %v702, %v715
    %719 = vst [vmem:[#allocation7] sm:$0xff] %v716
    %720 = vst [vmem:[#allocation7 + $0x8] sm:$0xff] %v717
    %721 = vst [vmem:[#allocation7 + $0x10] sm:$0xff] %v718
    // Predicated region
    $region22: #{item_tower_forward.1} parent=1 // pred_check
      _
    $region23: #{item_tower_forward.1} parent=1 // pred_check_branch
      %723 = sbr.rel (0) target = $region25
    $region24: #{item_tower_forward.1} parent=1 // pred_region
      %s725 = ssub.s32 384, 384
      %726 = vsyncadd [#allocation4], %s725
      %s728 = sshll.u32 [#allocation7], 4
      %s729 = int_to_ptr.vmem [resolvable:$true] %s728
      %731 = dma.vmem_to_hbm [thread:$0]  %s729, 384, %s3, [#allocation4]
    $region25: #{item_tower_forward.1} parent=1 // pred_fallthru
      _
    // Predicated region
    $region26: #{item_tower_forward.1} parent=1 // pred_check
      _
    $region27: #{item_tower_forward.1} parent=1 // pred_check_branch
      %733 = sbr.rel (0) target = $region29
    $region28: #{item_tower_forward.1} parent=1 // pred_region
      %734 = dma.done [#allocation4], 384
    $region29: #{item_tower_forward.1} parent=1 // pred_fallthru
      _
    %735 = vsyncpa [#allocation3], 1
    %736 = vsyncpa [#allocation6], 1
    %737 = vsyncpa [#allocation4], 1

</llo_original>
